<compile_context>
chip_gen: v7x
topology: tpu7x:2x2x1
jax: 0.10.0
libtpu: 0.0.40
codegen_flags: <defaults>
</compile_context>

<pallas_src>
import functools

import jax
import jax.numpy as jnp
from jax.experimental import pallas as pl
from jax.experimental.pallas import tpu as pltpu

LANE_PAD = 128            # last-layer rhs padded to a full lane width for the MXU
H1, H2, N_CLASSES = 384, 192, 2

VMEM_TILE_BUDGET = 20 * 1024 * 1024   # per-tile working-set cap (safe on v7x)
VMEM_LIMIT_BYTES = 32 * 1024 * 1024   # scoped VMEM limit (>= v5e's 16 MiB default)


def _round_up(n, m):
    return ((n + m - 1) // m) * m


def domain_classifier_kernel(x_ref, w1_ref, b1_ref, w2_ref, b2_ref,
                             w3_ref, b3_ref, o_ref):
    # Layer 1: Linear(D, 384) + ReLU   (bf16 matmul, f32 accumulate)
    x = x_ref[...].astype(jnp.bfloat16)
    h1 = jnp.dot(x, w1_ref[...], preferred_element_type=jnp.float32) + b1_ref[...]
    h1 = jnp.maximum(h1, 0.0).astype(jnp.bfloat16)

    # Layer 2: Linear(384, 192) + ReLU
    h2 = jnp.dot(h1, w2_ref[...], preferred_element_type=jnp.float32) + b2_ref[...]
    h2 = jnp.maximum(h2, 0.0).astype(jnp.bfloat16)

    # Layer 3: Linear(192, 2) -- rhs padded to 128 lanes (pad cols are zero)
    logits = jnp.dot(h2, w3_ref[...], preferred_element_type=jnp.float32) + b3_ref[...]

    # LogSoftmax over the 2 real classes only, via the 2-class log1p identity:
    #   lse = max(l0, l1) + log1p(exp(-|l0 - l1|))          (single EUP exp)
    l0 = logits[:, 0:1]
    l1 = logits[:, 1:2]
    m = jnp.maximum(l0, l1)
    lse = m + jnp.log1p(jnp.exp(-jnp.abs(l0 - l1)))
    o_ref[...] = logits[:, 0:N_CLASSES] - lse


def prepare_params(params):
    """One-time conversion of f32 (w, b) params into kernel layout:
    bf16 weights (MXU-native), f32 biases as (1, N) rows, and the final layer
    padded to 128 output lanes with zero weights / zero bias."""
    w1, b1, w2, b2, w3, b3 = params
    w3p = jnp.zeros((w3.shape[0], LANE_PAD), jnp.float32).at[:, :N_CLASSES].set(w3)
    b3p = jnp.zeros((1, LANE_PAD), jnp.float32).at[:, :N_CLASSES].set(b3)
    return (w1.astype(jnp.bfloat16), b1.reshape(1, -1).astype(jnp.float32),
            w2.astype(jnp.bfloat16), b2.reshape(1, -1).astype(jnp.float32),
            w3p.astype(jnp.bfloat16), b3p)


def _tile_bytes(tb, D):
    """Conservative per-tile VMEM estimate (double-buffered x, f32 activations,
    bf16 matmul-lhs copies, lane-padded output staging, resident bf16 weights)."""
    d_pad = max(D, 128)
    x_bytes = 2 * tb * d_pad * 4                      # double-buffered f32 x block
    act_f32 = tb * (H1 + H2 + LANE_PAD) * 4           # h1 / h2 / logits in f32
    act_bf16 = tb * (d_pad + H1 + H2) * 2             # bf16 casts of matmul lhs
    out_bytes = 2 * tb * 128 * 4                      # output block (lane-padded, x2)
    w_bytes = (D * H1 + H1 * H2 + H2 * LANE_PAD) * 2  # resident bf16 weights
    return x_bytes + act_f32 + act_bf16 + out_bytes + w_bytes


def _pick_tile(B, D, tile_b):
    """Row-tile selection: multiple of 16 (bf16 sublane packing), capped by a
    VMEM working-set budget, and split so the grid has >=2 steps for mid-size
    batches (lets v7x megacore use both TensorCores)."""
    tb = max(16, (int(tile_b) // 16) * 16)
    # Shrink until the per-tile working set fits the budget.
    while tb > 16 and _tile_bytes(tb, D) > VMEM_TILE_BUDGET:
        tb = max(16, (tb // 2 // 16) * 16)
    b16 = _round_up(B, 16)
    if b16 <= tb:
        # Whole batch fits in one tile: split into (up to) two tiles so both
        # TensorCores on v7x get work (harmless on single-TC chips).
        tb = min(tb, _round_up(pl.cdiv(B, 2), 16))
    tb = min(tb, b16)
    assert tb % 16 == 0 and tb >= 16
    b_pad = _round_up(B, tb)
    return tb, b_pad


@functools.partial(jax.jit, static_argnames=("tile_b",))
def domain_classifier_forward(x, kernel_params, *, tile_b=2048):
    """x: (B, D) float32.  Returns log-probabilities of shape (B, 2) float32."""
    w1, b1, w2, b2, w3p, b3p = kernel_params
    B, D = x.shape

    tb, b_pad = _pick_tile(B, D, tile_b)
    if b_pad != B:
        x = jnp.pad(x, ((0, b_pad - B), (0, 0)))

    grid = (b_pad // tb,)
    const = lambda shape: pl.BlockSpec(shape, lambda i: (0, 0))

    out = pl.pallas_call(
        domain_classifier_kernel,
        out_shape=jax.ShapeDtypeStruct((b_pad, N_CLASSES), jnp.float32),
        grid=grid,
        in_specs=[
            pl.BlockSpec((tb, D), lambda i: (i, 0)),   # x: tiled over batch
            const((D, H1)), const((1, H1)),            # weights/biases: resident
            const((H1, H2)), const((1, H2)),
            const((H2, LANE_PAD)), const((1, LANE_PAD)),
        ],
        out_specs=pl.BlockSpec((tb, N_CLASSES), lambda i: (i, 0)),
        compiler_params=pltpu.CompilerParams(
            dimension_semantics=("parallel",),
            vmem_limit_bytes=VMEM_LIMIT_BYTES),
    )(x, w1, b1, w2, b2, w3p, b3p)

    return out[:B]


def init_params(key, input_dim):
    """PyTorch-style U(-1/sqrt(fan_in), 1/sqrt(fan_in)) init, f32."""
    dims = [(input_dim, H1), (H1, H2), (H2, N_CLASSES)]
    params = []
    for i, (fan_in, fan_out) in enumerate(dims):
        kw, kb = jax.random.split(jax.random.fold_in(key, i))
        bound = 1.0 / jnp.sqrt(fan_in)
        w = jax.random.uniform(kw, (fan_in, fan_out), jnp.float32, -bound, bound)
        b = jax.random.uniform(kb, (fan_out,), jnp.float32, -bound, bound)
        params += [w, b]
    return tuple(params)


def reference_forward(x, params):
    w1, b1, w2, b2, w3, b3 = params
    h1 = jnp.maximum(x @ w1 + b1, 0.0)
    h2 = jnp.maximum(h1 @ w2 + b2, 0.0)
    return jax.nn.log_softmax(h2 @ w3 + b3, axis=1)


if __name__ == "__main__":
    key = jax.random.PRNGKey(0)
    B, D = 8, 32  # small batch, input_dim=32

    kx, kp = jax.random.split(key)
    x = jax.random.normal(kx, (B, D), jnp.float32)
    params = init_params(kp, D)
    kernel_params = prepare_params(params)   # one-time: bf16 cast + lane padding

    out = domain_classifier_forward(x, kernel_params)
    out = jax.block_until_ready(out)

    ref = reference_forward(x, params)
    assert out.shape == (B, N_CLASSES)
    # bf16 MXU path with f32 accumulation -> compare with a relaxed tolerance.
    assert jnp.allclose(out, ref, atol=5e-2, rtol=5e-2), "mismatch vs reference"

    print("KERNEL_OK")
</pallas_src>

<mosaic_0001>
module attributes {stable_mosaic.version = 11 : i64} {
  func.func @domain_classifier_kernel(%arg0: i32, %arg1: memref<16x32xf32, #tpu.memory_space<vmem>>, %arg2: memref<32x384xbf16, #tpu.memory_space<vmem>>, %arg3: memref<1x384xf32, #tpu.memory_space<vmem>>, %arg4: memref<384x192xbf16, #tpu.memory_space<vmem>>, %arg5: memref<1x192xf32, #tpu.memory_space<vmem>>, %arg6: memref<192x128xbf16, #tpu.memory_space<vmem>>, %arg7: memref<1x128xf32, #tpu.memory_space<vmem>>, %arg8: memref<16x2xf32, #tpu.memory_space<vmem>>) attributes {dimension_semantics = [#tpu.dimension_semantics<parallel>], iteration_bounds = array<i64: 1>, scalar_prefetch = 0 : i64, scratch_operands = 0 : i64, tpu.core_type = #tpu.core_type<tc>, window_params = [{transform_indices = @transform_0, window_bounds = array<i64: 16, 32>}, {pipeline_mode = #tpu.pipeline_mode<synchronous>, transform_indices = @transform_1, window_bounds = array<i64: 32, 384>}, {pipeline_mode = #tpu.pipeline_mode<synchronous>, transform_indices = @transform_2, window_bounds = array<i64: 1, 384>}, {pipeline_mode = #tpu.pipeline_mode<synchronous>, transform_indices = @transform_3, window_bounds = array<i64: 384, 192>}, {pipeline_mode = #tpu.pipeline_mode<synchronous>, transform_indices = @transform_4, window_bounds = array<i64: 1, 192>}, {pipeline_mode = #tpu.pipeline_mode<synchronous>, transform_indices = @transform_5, window_bounds = array<i64: 192, 128>}, {pipeline_mode = #tpu.pipeline_mode<synchronous>, transform_indices = @transform_6, window_bounds = array<i64: 1, 128>}, {transform_indices = @transform_7, window_bounds = array<i64: 16, 2>}]} {
    %c0 = arith.constant 0 : index
    %c0_0 = arith.constant 0 : index
    %0 = vector.load %arg1[%c0, %c0_0] : memref<16x32xf32, #tpu.memory_space<vmem>>, vector<16x32xf32>
    %1 = arith.truncf %0 : vector<16x32xf32> to vector<16x32xbf16>
    %c0_1 = arith.constant 0 : index
    %c0_2 = arith.constant 0 : index
    %2 = vector.load %arg2[%c0_1, %c0_2] : memref<32x384xbf16, #tpu.memory_space<vmem>>, vector<32x384xbf16>
    %cst = arith.constant dense<0.000000e+00> : vector<16x384xf32>
    %3 = tpu.matmul %1, %2, %cst {dimension_numbers = #tpu.dot_dimension_numbers<[1], [0], [0], [1], [0, 0, 1, 1], [], []>} : vector<16x32xbf16>, vector<32x384xbf16>, vector<16x384xf32> -> vector<16x384xf32>
    %c0_3 = arith.constant 0 : index
    %c0_4 = arith.constant 0 : index
    %4 = vector.load %arg3[%c0_3, %c0_4] : memref<1x384xf32, #tpu.memory_space<vmem>>, vector<1x384xf32>
    %5 = vector.broadcast %4 : vector<1x384xf32> to vector<16x384xf32>
    %6 = arith.addf %3, %5 : vector<16x384xf32>
    %cst_5 = arith.constant 0.000000e+00 : f32
    %7 = vector.broadcast %cst_5 : f32 to vector<16x384xf32>
    %8 = arith.maximumf %6, %7 : vector<16x384xf32>
    %9 = arith.truncf %8 : vector<16x384xf32> to vector<16x384xbf16>
    %c0_6 = arith.constant 0 : index
    %c0_7 = arith.constant 0 : index
    %10 = vector.load %arg4[%c0_6, %c0_7] : memref<384x192xbf16, #tpu.memory_space<vmem>>, vector<384x192xbf16>
    %cst_8 = arith.constant dense<0.000000e+00> : vector<16x192xf32>
    %11 = tpu.matmul %9, %10, %cst_8 {dimension_numbers = #tpu.dot_dimension_numbers<[1], [0], [0], [1], [0, 0, 1, 1], [], []>} : vector<16x384xbf16>, vector<384x192xbf16>, vector<16x192xf32> -> vector<16x192xf32>
    %c0_9 = arith.constant 0 : index
    %c0_10 = arith.constant 0 : index
    %12 = vector.load %arg5[%c0_9, %c0_10] : memref<1x192xf32, #tpu.memory_space<vmem>>, vector<1x192xf32>
    %13 = vector.broadcast %12 : vector<1x192xf32> to vector<16x192xf32>
    %14 = arith.addf %11, %13 : vector<16x192xf32>
    %cst_11 = arith.constant 0.000000e+00 : f32
    %15 = vector.broadcast %cst_11 : f32 to vector<16x192xf32>
    %16 = arith.maximumf %14, %15 : vector<16x192xf32>
    %17 = arith.truncf %16 : vector<16x192xf32> to vector<16x192xbf16>
    %c0_12 = arith.constant 0 : index
    %c0_13 = arith.constant 0 : index
    %18 = vector.load %arg6[%c0_12, %c0_13] : memref<192x128xbf16, #tpu.memory_space<vmem>>, vector<192x128xbf16>
    %cst_14 = arith.constant dense<0.000000e+00> : vector<16x128xf32>
    %19 = tpu.matmul %17, %18, %cst_14 {dimension_numbers = #tpu.dot_dimension_numbers<[1], [0], [0], [1], [0, 0, 1, 1], [], []>} : vector<16x192xbf16>, vector<192x128xbf16>, vector<16x128xf32> -> vector<16x128xf32>
    %c0_15 = arith.constant 0 : index
    %c0_16 = arith.constant 0 : index
    %20 = vector.load %arg7[%c0_15, %c0_16] : memref<1x128xf32, #tpu.memory_space<vmem>>, vector<1x128xf32>
    %21 = vector.broadcast %20 : vector<1x128xf32> to vector<16x128xf32>
    %22 = arith.addf %19, %21 : vector<16x128xf32>
    %23 = vector.extract_strided_slice %22 {offsets = [0, 0], sizes = [16, 1], strides = [1, 1]} : vector<16x128xf32> to vector<16x1xf32>
    %24 = vector.extract_strided_slice %22 {offsets = [0, 1], sizes = [16, 1], strides = [1, 1]} : vector<16x128xf32> to vector<16x1xf32>
    %25 = arith.maximumf %23, %24 : vector<16x1xf32>
    %26 = arith.subf %23, %24 : vector<16x1xf32>
    %27 = math.absf %26 : vector<16x1xf32>
    %cst_17 = arith.constant 0.000000e+00 : f32
    %28 = vector.broadcast %cst_17 : f32 to vector<16x1xf32>
    %29 = arith.subf %28, %27 : vector<16x1xf32>
    %30 = math.exp %29 : vector<16x1xf32>
    %31 = math.log1p %30 : vector<16x1xf32>
    %32 = arith.addf %25, %31 : vector<16x1xf32>
    %33 = vector.extract_strided_slice %22 {offsets = [0, 0], sizes = [16, 2], strides = [1, 1]} : vector<16x128xf32> to vector<16x2xf32>
    %34 = vector.broadcast %32 : vector<16x1xf32> to vector<16x2xf32>
    %35 = arith.subf %33, %34 : vector<16x2xf32>
    %c0_18 = arith.constant 0 : index
    %c0_19 = arith.constant 0 : index
    %36 = vector.load %arg8[%c0_18, %c0_19] : memref<16x2xf32, #tpu.memory_space<vmem>>, vector<16x2xf32>
    tpu.vector_store %arg8[%c0_18, %c0_19], %35 {strides = array<i32>} : memref<16x2xf32, #tpu.memory_space<vmem>>, vector<16x2xf32>,
    return
  }
  func.func @transform_0(%arg0: i32) -> (i32, i32) {
    %c0_i32 = arith.constant 0 : i32
    %c0_i32_0 = arith.constant 0 : i32
    return %arg0, %c0_i32 : i32, i32
  }
  func.func @transform_1(%arg0: i32) -> (i32, i32) {
    %c0_i32 = arith.constant 0 : i32
    %c0_i32_0 = arith.constant 0 : i32
    %c0_i32_1 = arith.constant 0 : i32
    return %c0_i32, %c0_i32_0 : i32, i32
  }
  func.func @transform_2(%arg0: i32) -> (i32, i32) {
    %c0_i32 = arith.constant 0 : i32
    %c0_i32_0 = arith.constant 0 : i32
    %c0_i32_1 = arith.constant 0 : i32
    return %c0_i32, %c0_i32_0 : i32, i32
  }
  func.func @transform_3(%arg0: i32) -> (i32, i32) {
    %c0_i32 = arith.constant 0 : i32
    %c0_i32_0 = arith.constant 0 : i32
    %c0_i32_1 = arith.constant 0 : i32
    return %c0_i32, %c0_i32_0 : i32, i32
  }
  func.func @transform_4(%arg0: i32) -> (i32, i32) {
    %c0_i32 = arith.constant 0 : i32
    %c0_i32_0 = arith.constant 0 : i32
    %c0_i32_1 = arith.constant 0 : i32
    return %c0_i32, %c0_i32_0 : i32, i32
  }
  func.func @transform_5(%arg0: i32) -> (i32, i32) {
    %c0_i32 = arith.constant 0 : i32
    %c0_i32_0 = arith.constant 0 : i32
    %c0_i32_1 = arith.constant 0 : i32
    return %c0_i32, %c0_i32_0 : i32, i32
  }
  func.func @transform_6(%arg0: i32) -> (i32, i32) {
    %c0_i32 = arith.constant 0 : i32
    %c0_i32_0 = arith.constant 0 : i32
    %c0_i32_1 = arith.constant 0 : i32
    return %c0_i32, %c0_i32_0 : i32, i32
  }
  func.func @transform_7(%arg0: i32) -> (i32, i32) {
    %c0_i32 = arith.constant 0 : i32
    %c0_i32_0 = arith.constant 0 : i32
    return %arg0, %c0_i32 : i32, i32
  }
}

</mosaic_0001>

<llo_original>
// kernel: domain_classifier_forward.1
$region0: #{domain_classifier_forward.1}
  #allocation0 [shape = 'u32[]', space=smem, size = 0x4, offset = 0x4, fixed_abs, tag = 'smem constant byte address 0x4 - core index']
  #allocation1 [shape = 'u32[144,128]{1,0:T(1,128)}', space=vmem, size = 0x12000, scoped, tag = 'internal scratch']
  %s0 = inlined_call_operand.vmem [shape: f32[16,32], index: 0, kind: input, shape index: {}]
  %s1 = inlined_call_operand.vmem [shape: bf16[32,384], index: 1, kind: input, shape index: {}]
  %s2 = inlined_call_operand.vmem [shape: f32[1,384], index: 2, kind: input, shape index: {}]
  %s3 = inlined_call_operand.vmem [shape: bf16[384,192], index: 3, kind: input, shape index: {}]
  %s4 = inlined_call_operand.vmem [shape: f32[1,192], index: 4, kind: input, shape index: {}]
  %s5 = inlined_call_operand.vmem [shape: bf16[192,128], index: 5, kind: input, shape index: {}]
  %s6 = inlined_call_operand.vmem [shape: f32[1,128], index: 6, kind: input, shape index: {}]
  %s7 = inlined_call_operand.vmem [shape: f32[16,2], index: 7, kind: output, shape index: {}]
  %s8 = sld [smem:[#allocation0]]
  $region38: #{domain_classifier_forward.1} parent=0
    _
  %s10 = ssub.s32 1, %s8
  %s11 = scalar_select 0, %s10, %s8
  // Predicated region
  $region2: #{domain_classifier_forward.1} parent=0 // pred_check
    _
  $region3: #{domain_classifier_forward.1} parent=0 // pred_check_branch
    %13 = sbr.rel (0) target = $region5
  $region4: #{domain_classifier_forward.1} parent=0 // pred_region
    _
  $region5: #{domain_classifier_forward.1} parent=0 // pred_fallthru
    _
  // Predicated region
  $region6: #{domain_classifier_forward.1} parent=0 // pred_check
    _
  $region7: #{domain_classifier_forward.1} parent=0 // pred_check_branch
    %15 = sbr.rel (0) target = $region9
  $region8: #{domain_classifier_forward.1} parent=0 // pred_region
    _
  $region9: #{domain_classifier_forward.1} parent=0 // pred_fallthru
    _
  // Predicated region
  $region10: #{domain_classifier_forward.1} parent=0 // pred_check
    _
  $region11: #{domain_classifier_forward.1} parent=0 // pred_check_branch
    %17 = sbr.rel (0) target = $region13
  $region12: #{domain_classifier_forward.1} parent=0 // pred_region
    _
  $region13: #{domain_classifier_forward.1} parent=0 // pred_fallthru
    _
  // Predicated region
  $region14: #{domain_classifier_forward.1} parent=0 // pred_check
    _
  $region15: #{domain_classifier_forward.1} parent=0 // pred_check_branch
    %19 = sbr.rel (0) target = $region17
  $region16: #{domain_classifier_forward.1} parent=0 // pred_region
    _
  $region17: #{domain_classifier_forward.1} parent=0 // pred_fallthru
    _
  // Predicated region
  $region18: #{domain_classifier_forward.1} parent=0 // pred_check
    _
  $region19: #{domain_classifier_forward.1} parent=0 // pred_check_branch
    %21 = sbr.rel (0) target = $region21
  $region20: #{domain_classifier_forward.1} parent=0 // pred_region
    _
  $region21: #{domain_classifier_forward.1} parent=0 // pred_fallthru
    _
  // Predicated region
  $region22: #{domain_classifier_forward.1} parent=0 // pred_check
    _
  $region23: #{domain_classifier_forward.1} parent=0 // pred_check_branch
    %23 = sbr.rel (0) target = $region25
  $region24: #{domain_classifier_forward.1} parent=0 // pred_region
    _
  $region25: #{domain_classifier_forward.1} parent=0 // pred_fallthru
    _
  // Predicated region
  $region26: #{domain_classifier_forward.1} parent=0 // pred_check
    _
  $region27: #{domain_classifier_forward.1} parent=0 // pred_check_branch
    %25 = sbr.rel (0) target = $region29
  $region28: #{domain_classifier_forward.1} parent=0 // pred_region
    _
  $region29: #{domain_classifier_forward.1} parent=0 // pred_fallthru
    _
  %v27 = vld [vmem:[%s0] sm:$0xff]
  %v28 = vld [vmem:[%s0 + $0x8] sm:$0xff]
  %v29 = vpack.c.bf16 %v28, %v27
  %v30 = vld [vmem:[%s1] sm:$0xff]
  %v31 = vld [vmem:[%s1 + $0x8] sm:$0xf]
  %v32 = vld [vmem:[%s1 + $0xc] sm:$0xff]
  %v33 = vld [vmem:[%s1 + $0x14] sm:$0xf]
  %v34 = vld [vmem:[%s1 + $0x18] sm:$0xff]
  %v35 = vld [vmem:[%s1 + $0x20] sm:$0xf]
  %v36 = vld [vmem:[%s1 + $0x24] sm:$0xff]
  %v37 = vld [vmem:[%s1 + $0x2c] sm:$0xf]
  %v38 = vld [vmem:[%s2] sm:$0x7]
  %v40 = vlaneseq
  %v41 = vshrl.u32 %v40, 7
  %v42 = vsub.s32 0, %v41
  %v43 = vrot.slane %v38, %v42
  %v44 = vlaneseq
  %v45 = vshrl.u32 %v44, 7
  %v46 = vsub.s32 1, %v45
  %v47 = vrot.slane %v38, %v46
  %v48 = vlaneseq
  %v49 = vshrl.u32 %v48, 7
  %v50 = vsub.s32 2, %v49
  %v51 = vrot.slane %v38, %v50
  %v63 = vunpack.c.l.b16 %v30
  %v64 = vunpack.c.h.b16 %v30
  %v65 = vunpack.c.l.b16 %v31
  %v66 = vunpack.c.l.b16 %v32
  %v67 = vunpack.c.h.b16 %v32
  %v68 = vunpack.c.l.b16 %v33
  %v69 = vunpack.c.l.b16 %v34
  %v70 = vunpack.c.h.b16 %v34
  %v71 = vunpack.c.l.b16 %v35
  %v72 = vunpack.c.l.b16 %v36
  %v73 = vunpack.c.h.b16 %v36
  %v74 = vunpack.c.l.b16 %v37
  %v75 = vpack.c.b16 %v66, %v63
  %v76 = vpack.c.b16 %v67, %v64
  %v77 = vpack.c.b16 %v68, %v65
  %v78 = vpack.c.b16 %v72, %v69
  %v79 = vpack.c.b16 %v73, %v70
  %v80 = vpack.c.b16 %v74, %v71
  %vm87 = vcmask 261120
  %v89 = vsel %vm87, %v29, 0
  %91 = vmatprep.subr.bf16.mxu0 %v76
  %92 = vmatpush1.bf16.msra.mxu0 %v75
  %93 = vmatprep.subr.bf16.mxu0 %v79
  %94 = vmatpush1.bf16.msra.mxu0 %v78
  %95 = vmatprep.subr.bf16.mxu0 0
  %96 = vmatpush1.bf16.msra.mxu0 0
  %97 = vmatprep.subr.bf16.mxu0 0
  %98 = vmatpush1.bf16.msra.mxu0 0
  %99 = vmatprep.subr.bf16.mxu0 0
  %100 = vmatpush1.bf16.msra.mxu0 0
  %101 = vmatprep.subr.bf16.mxu0 0
  %102 = vmatpush1.bf16.msra.mxu0 0
  %103 = vmatprep.subr.bf16.mxu0 0
  %104 = vmatpush1.bf16.msra.mxu0 0
  %105 = vmatprep.subr.bf16.mxu0 0
  %106 = vmatpush1.bf16.msra.mxu0 0
  %107 = vmatprep.subr.bf16.mxu0 0
  %108 = vmatpush1.bf16.msra.mxu0 0
  %109 = vmatprep.subr.bf16.mxu0 0
  %110 = vmatpush1.bf16.msra.mxu0 0
  %111 = vmatprep.subr.bf16.mxu0 0
  %112 = vmatpush1.bf16.msra.mxu0 0
  %113 = vmatprep.subr.bf16.mxu0 0
  %114 = vmatpush1.bf16.msra.mxu0 0
  %115 = vmatprep.subr.bf16.mxu0 0
  %116 = vmatpush1.bf16.msra.mxu0 0
  %117 = vmatprep.subr.bf16.mxu0 0
  %118 = vmatpush1.bf16.msra.mxu0 0
  %119 = vmatprep.subr.bf16.mxu0 0
  %120 = vmatpush1.bf16.msra.mxu0 0
  %121 = vmatprep.subr.bf16.mxu0 0
  %122 = vmatpush1.bf16.msra.mxu0 0
  %123 = vmatprep.mubr.bf16.mxu0 0
  %124 = vmatmul.mubr.bf16.gmra.mrb[0].mxu0 %v89
  %v125 = vpop.f32.mrb[0].mxu0
  %v126 = vadd.f32 %v43, %v125
  %v127 = vpop.f32.mrb[0].mxu0
  %v128 = vadd.f32 %v47, %v127
  %v129 = vpop.f32.mrb[0].mxu0
  %v130 = vadd.f32 %v43, %v129
  %v131 = vpop.f32.mrb[0].mxu0
  %v132 = vadd.f32 %v47, %v131
  %133 = vdwg.mxu0
  %134 = vmatprep.subr.bf16.mxu0 0
  %135 = vmatpush1.bf16.msra.mxu0 %v77
  %136 = vmatprep.subr.bf16.mxu0 0
  %137 = vmatpush1.bf16.msra.mxu0 %v80
  %138 = vmatprep.subr.bf16.mxu0 0
  %139 = vmatpush1.bf16.msra.mxu0 0
  %140 = vmatprep.subr.bf16.mxu0 0
  %141 = vmatpush1.bf16.msra.mxu0 0
  %142 = vmatprep.subr.bf16.mxu0 0
  %143 = vmatpush1.bf16.msra.mxu0 0
  %144 = vmatprep.subr.bf16.mxu0 0
  %145 = vmatpush1.bf16.msra.mxu0 0
  %146 = vmatprep.subr.bf16.mxu0 0
  %147 = vmatpush1.bf16.msra.mxu0 0
  %148 = vmatprep.subr.bf16.mxu0 0
  %149 = vmatpush1.bf16.msra.mxu0 0
  %150 = vmatprep.subr.bf16.mxu0 0
  %151 = vmatpush1.bf16.msra.mxu0 0
  %152 = vmatprep.subr.bf16.mxu0 0
  %153 = vmatpush1.bf16.msra.mxu0 0
  %154 = vmatprep.subr.bf16.mxu0 0
  %155 = vmatpush1.bf16.msra.mxu0 0
  %156 = vmatprep.subr.bf16.mxu0 0
  %157 = vmatpush1.bf16.msra.mxu0 0
  %158 = vmatprep.subr.bf16.mxu0 0
  %159 = vmatpush1.bf16.msra.mxu0 0
  %160 = vmatprep.subr.bf16.mxu0 0
  %161 = vmatpush1.bf16.msra.mxu0 0
  %162 = vmatprep.subr.bf16.mxu0 0
  %163 = vmatpush1.bf16.msra.mxu0 0
  %164 = vmatprep.subr.bf16.mxu0 0
  %165 = vmatpush1.bf16.msra.mxu0 0
  %166 = vmatprep.mubr.bf16.mxu0 0
  %167 = vmatmul.mubr.bf16.gmra.mrb[0].mxu0 %v89
  %v168 = vpop.f32.mrb[0].mxu0
  %v169 = vadd.f32 %v51, %v168
  %v170 = vpop.f32.mrb[0].mxu0
  %v171 = vpop.f32.mrb[0].mxu0
  %v172 = vadd.f32 %v51, %v171
  %v173 = vpop.f32.mrb[0].mxu0
  %174 = vdwg.mxu0
  %v175 = vmax.f32 %v126, 0.0
  %v176 = vmax.f32 %v128, 0.0
  %v177 = vmax.f32 %v169, 0.0
  %v178 = vmax.f32 %v130, 0.0
  %v179 = vmax.f32 %v132, 0.0
  %v180 = vmax.f32 %v172, 0.0
  %v181 = vpack.c.bf16 %v178, %v175
  %v182 = vpack.c.bf16 %v179, %v176
  %v183 = vpack.c.bf16 %v180, %v177
  %v184 = vld [vmem:[%s3] sm:$0xff]
  %v185 = vld [vmem:[%s3 + $0x8] sm:$0xff]
  %v186 = vld [vmem:[%s3 + $0x10] sm:$0xff]
  %v187 = vld [vmem:[%s3 + $0x18] sm:$0xff]
  %v188 = vld [vmem:[%s3 + $0x20] sm:$0xff]
  %v189 = vld [vmem:[%s3 + $0x28] sm:$0xff]
  %v190 = vld [vmem:[%s3 + $0x30] sm:$0xff]
  %v191 = vld [vmem:[%s3 + $0x38] sm:$0xff]
  %v192 = vld [vmem:[%s3 + $0x40] sm:$0xff]
  %v193 = vld [vmem:[%s3 + $0x48] sm:$0xff]
  %v194 = vld [vmem:[%s3 + $0x50] sm:$0xff]
  %v195 = vld [vmem:[%s3 + $0x58] sm:$0xff]
  %v196 = vld [vmem:[%s3 + $0x60] sm:$0xff]
  %v197 = vld [vmem:[%s3 + $0x68] sm:$0xff]
  %v198 = vld [vmem:[%s3 + $0x70] sm:$0xff]
  %v199 = vld [vmem:[%s3 + $0x78] sm:$0xff]
  %v200 = vld [vmem:[%s3 + $0x80] sm:$0xff]
  %v201 = vld [vmem:[%s3 + $0x88] sm:$0xff]
  %v202 = vld [vmem:[%s3 + $0x90] sm:$0xff]
  %v203 = vld [vmem:[%s3 + $0x98] sm:$0xff]
  %v204 = vld [vmem:[%s3 + $0xa0] sm:$0xff]
  %v205 = vld [vmem:[%s3 + $0xa8] sm:$0xff]
  %v206 = vld [vmem:[%s3 + $0xb0] sm:$0xff]
  %v207 = vld [vmem:[%s3 + $0xb8] sm:$0xff]
  %v208 = vld [vmem:[%s3 + $0xc0] sm:$0xff]
  %v209 = vld [vmem:[%s3 + $0xc8] sm:$0xff]
  %v210 = vld [vmem:[%s3 + $0xd0] sm:$0xff]
  %v211 = vld [vmem:[%s3 + $0xd8] sm:$0xff]
  %v212 = vld [vmem:[%s3 + $0xe0] sm:$0xff]
  %v213 = vld [vmem:[%s3 + $0xe8] sm:$0xff]
  %v214 = vld [vmem:[%s3 + $0xf0] sm:$0xff]
  %v215 = vld [vmem:[%s3 + $0xf8] sm:$0xff]
  %v216 = vld [vmem:[%s3 + $0x100] sm:$0xff]
  %v217 = vld [vmem:[%s3 + $0x108] sm:$0xff]
  %v218 = vld [vmem:[%s3 + $0x110] sm:$0xff]
  %v219 = vld [vmem:[%s3 + $0x118] sm:$0xff]
  %v220 = vld [vmem:[%s3 + $0x120] sm:$0xff]
  %v221 = vld [vmem:[%s3 + $0x128] sm:$0xff]
  %v222 = vld [vmem:[%s3 + $0x130] sm:$0xff]
  %v223 = vld [vmem:[%s3 + $0x138] sm:$0xff]
  %v224 = vld [vmem:[%s3 + $0x140] sm:$0xff]
  %v225 = vld [vmem:[%s3 + $0x148] sm:$0xff]
  %v226 = vld [vmem:[%s3 + $0x150] sm:$0xff]
  %v227 = vld [vmem:[%s3 + $0x158] sm:$0xff]
  %v228 = vld [vmem:[%s3 + $0x160] sm:$0xff]
  %v229 = vld [vmem:[%s3 + $0x168] sm:$0xff]
  %v230 = vld [vmem:[%s3 + $0x170] sm:$0xff]
  %v231 = vld [vmem:[%s3 + $0x178] sm:$0xff]
  %v232 = vld [vmem:[%s4] sm:$0x3]
  %v234 = vlaneseq
  %v235 = vshrl.u32 %v234, 7
  %v236 = vsub.s32 0, %v235
  %v237 = vrot.slane %v232, %v236
  %v238 = vlaneseq
  %v239 = vshrl.u32 %v238, 7
  %v240 = vsub.s32 1, %v239
  %v241 = vrot.slane %v232, %v240
  %v292 = vunpack.c.l.b16 %v184
  %v293 = vunpack.c.h.b16 %v184
  %v294 = vunpack.c.l.b16 %v185
  %v295 = vunpack.c.h.b16 %v185
  %v296 = vunpack.c.l.b16 %v186
  %v297 = vunpack.c.h.b16 %v186
  %v298 = vunpack.c.l.b16 %v187
  %v299 = vunpack.c.h.b16 %v187
  %v300 = vunpack.c.l.b16 %v188
  %v301 = vunpack.c.h.b16 %v188
  %v302 = vunpack.c.l.b16 %v189
  %v303 = vunpack.c.h.b16 %v189
  %v304 = vunpack.c.l.b16 %v190
  %v305 = vunpack.c.h.b16 %v190
  %v306 = vunpack.c.l.b16 %v191
  %v307 = vunpack.c.h.b16 %v191
  %v308 = vunpack.c.l.b16 %v192
  %v309 = vunpack.c.h.b16 %v192
  %v310 = vunpack.c.l.b16 %v193
  %v311 = vunpack.c.h.b16 %v193
  %v312 = vunpack.c.l.b16 %v194
  %v313 = vunpack.c.h.b16 %v194
  %v314 = vunpack.c.l.b16 %v195
  %v315 = vunpack.c.h.b16 %v195
  %v316 = vunpack.c.l.b16 %v196
  %v317 = vunpack.c.h.b16 %v196
  %v318 = vunpack.c.l.b16 %v197
  %v319 = vunpack.c.h.b16 %v197
  %v320 = vunpack.c.l.b16 %v198
  %v321 = vunpack.c.h.b16 %v198
  %v322 = vunpack.c.l.b16 %v199
  %v323 = vunpack.c.h.b16 %v199
  %v324 = vunpack.c.l.b16 %v200
  %v325 = vunpack.c.h.b16 %v200
  %v326 = vunpack.c.l.b16 %v201
  %v327 = vunpack.c.h.b16 %v201
  %v328 = vunpack.c.l.b16 %v202
  %v329 = vunpack.c.h.b16 %v202
  %v330 = vunpack.c.l.b16 %v203
  %v331 = vunpack.c.h.b16 %v203
  %v332 = vunpack.c.l.b16 %v204
  %v333 = vunpack.c.h.b16 %v204
  %v334 = vunpack.c.l.b16 %v205
  %v335 = vunpack.c.h.b16 %v205
  %v336 = vunpack.c.l.b16 %v206
  %v337 = vunpack.c.h.b16 %v206
  %v338 = vunpack.c.l.b16 %v207
  %v339 = vunpack.c.h.b16 %v207
  %v340 = vunpack.c.l.b16 %v208
  %v341 = vunpack.c.h.b16 %v208
  %v342 = vunpack.c.l.b16 %v209
  %v343 = vunpack.c.h.b16 %v209
  %v344 = vunpack.c.l.b16 %v210
  %v345 = vunpack.c.h.b16 %v210
  %v346 = vunpack.c.l.b16 %v211
  %v347 = vunpack.c.h.b16 %v211
  %v348 = vunpack.c.l.b16 %v212
  %v349 = vunpack.c.h.b16 %v212
  %v350 = vunpack.c.l.b16 %v213
  %v351 = vunpack.c.h.b16 %v213
  %v352 = vunpack.c.l.b16 %v214
  %v353 = vunpack.c.h.b16 %v214
  %v354 = vunpack.c.l.b16 %v215
  %v355 = vunpack.c.h.b16 %v215
  %v356 = vunpack.c.l.b16 %v216
  %v357 = vunpack.c.h.b16 %v216
  %v358 = vunpack.c.l.b16 %v217
  %v359 = vunpack.c.h.b16 %v217
  %v360 = vunpack.c.l.b16 %v218
  %v361 = vunpack.c.h.b16 %v218
  %v362 = vunpack.c.l.b16 %v219
  %v363 = vunpack.c.h.b16 %v219
  %v364 = vunpack.c.l.b16 %v220
  %v365 = vunpack.c.h.b16 %v220
  %v366 = vunpack.c.l.b16 %v221
  %v367 = vunpack.c.h.b16 %v221
  %v368 = vunpack.c.l.b16 %v222
  %v369 = vunpack.c.h.b16 %v222
  %v370 = vunpack.c.l.b16 %v223
  %v371 = vunpack.c.h.b16 %v223
  %v372 = vunpack.c.l.b16 %v224
  %v373 = vunpack.c.h.b16 %v224
  %v374 = vunpack.c.l.b16 %v225
  %v375 = vunpack.c.h.b16 %v225
  %v376 = vunpack.c.l.b16 %v226
  %v377 = vunpack.c.h.b16 %v226
  %v378 = vunpack.c.l.b16 %v227
  %v379 = vunpack.c.h.b16 %v227
  %v380 = vunpack.c.l.b16 %v228
  %v381 = vunpack.c.h.b16 %v228
  %v382 = vunpack.c.l.b16 %v229
  %v383 = vunpack.c.h.b16 %v229
  %v384 = vunpack.c.l.b16 %v230
  %v385 = vunpack.c.h.b16 %v230
  %v386 = vunpack.c.l.b16 %v231
  %v387 = vunpack.c.h.b16 %v231
  %v388 = vpack.c.b16 %v294, %v292
  %v389 = vpack.c.b16 %v295, %v293
  %v390 = vpack.c.b16 %v298, %v296
  %v391 = vpack.c.b16 %v299, %v297
  %v392 = vpack.c.b16 %v302, %v300
  %v393 = vpack.c.b16 %v303, %v301
  %v394 = vpack.c.b16 %v306, %v304
  %v395 = vpack.c.b16 %v307, %v305
  %v396 = vpack.c.b16 %v310, %v308
  %v397 = vpack.c.b16 %v311, %v309
  %v398 = vpack.c.b16 %v314, %v312
  %v399 = vpack.c.b16 %v315, %v313
  %v400 = vpack.c.b16 %v318, %v316
  %v401 = vpack.c.b16 %v319, %v317
  %v402 = vpack.c.b16 %v322, %v320
  %v403 = vpack.c.b16 %v323, %v321
  %v404 = vpack.c.b16 %v326, %v324
  %v405 = vpack.c.b16 %v327, %v325
  %v406 = vpack.c.b16 %v330, %v328
  %v407 = vpack.c.b16 %v331, %v329
  %v408 = vpack.c.b16 %v334, %v332
  %v409 = vpack.c.b16 %v335, %v333
  %v410 = vpack.c.b16 %v338, %v336
  %v411 = vpack.c.b16 %v339, %v337
  %v412 = vpack.c.b16 %v342, %v340
  %v413 = vpack.c.b16 %v343, %v341
  %v414 = vpack.c.b16 %v346, %v344
  %v415 = vpack.c.b16 %v347, %v345
  %v416 = vpack.c.b16 %v350, %v348
  %v417 = vpack.c.b16 %v351, %v349
  %v418 = vpack.c.b16 %v354, %v352
  %v419 = vpack.c.b16 %v355, %v353
  %v420 = vpack.c.b16 %v358, %v356
  %v421 = vpack.c.b16 %v359, %v357
  %v422 = vpack.c.b16 %v362, %v360
  %v423 = vpack.c.b16 %v363, %v361
  %v424 = vpack.c.b16 %v366, %v364
  %v425 = vpack.c.b16 %v367, %v365
  %v426 = vpack.c.b16 %v370, %v368
  %v427 = vpack.c.b16 %v371, %v369
  %v428 = vpack.c.b16 %v374, %v372
  %v429 = vpack.c.b16 %v375, %v373
  %v430 = vpack.c.b16 %v378, %v376
  %v431 = vpack.c.b16 %v379, %v377
  %v432 = vpack.c.b16 %v382, %v380
  %v433 = vpack.c.b16 %v383, %v381
  %v434 = vpack.c.b16 %v386, %v384
  %v435 = vpack.c.b16 %v387, %v385
  %484 = vmatprep.subr.bf16.mxu0 %v389
  %485 = vmatpush1.bf16.msra.mxu0 %v388
  %486 = vmatprep.subr.bf16.mxu0 %v391
  %487 = vmatpush1.bf16.msra.mxu0 %v390
  %488 = vmatprep.subr.bf16.mxu0 %v393
  %489 = vmatpush1.bf16.msra.mxu0 %v392
  %490 = vmatprep.subr.bf16.mxu0 %v395
  %491 = vmatpush1.bf16.msra.mxu0 %v394
  %492 = vmatprep.subr.bf16.mxu0 %v397
  %493 = vmatpush1.bf16.msra.mxu0 %v396
  %494 = vmatprep.subr.bf16.mxu0 %v399
  %495 = vmatpush1.bf16.msra.mxu0 %v398
  %496 = vmatprep.subr.bf16.mxu0 %v401
  %497 = vmatpush1.bf16.msra.mxu0 %v400
  %498 = vmatprep.subr.bf16.mxu0 %v403
  %499 = vmatpush1.bf16.msra.mxu0 %v402
  %500 = vmatprep.subr.bf16.mxu0 %v405
  %501 = vmatpush1.bf16.msra.mxu0 %v404
  %502 = vmatprep.subr.bf16.mxu0 %v407
  %503 = vmatpush1.bf16.msra.mxu0 %v406
  %504 = vmatprep.subr.bf16.mxu0 %v409
  %505 = vmatpush1.bf16.msra.mxu0 %v408
  %506 = vmatprep.subr.bf16.mxu0 %v411
  %507 = vmatpush1.bf16.msra.mxu0 %v410
  %508 = vmatprep.subr.bf16.mxu0 %v413
  %509 = vmatpush1.bf16.msra.mxu0 %v412
  %510 = vmatprep.subr.bf16.mxu0 %v415
  %511 = vmatpush1.bf16.msra.mxu0 %v414
  %512 = vmatprep.subr.bf16.mxu0 %v417
  %513 = vmatpush1.bf16.msra.mxu0 %v416
  %514 = vmatprep.subr.bf16.mxu0 %v419
  %515 = vmatpush1.bf16.msra.mxu0 %v418
  %516 = vmatprep.mubr.bf16.mxu0 %v182
  %517 = vmatmul.mubr.bf16.gmra.mrb[0].mxu0 %v181
  %v518 = vpop.f32.mrb[0].mxu0
  %v519 = vadd.f32 %v237, %v518
  %v520 = vpop.f32.mrb[0].mxu0
  %v521 = vadd.f32 %v241, %v520
  %v522 = vpop.f32.mrb[0].mxu0
  %v523 = vadd.f32 %v237, %v522
  %v524 = vpop.f32.mrb[0].mxu0
  %v525 = vadd.f32 %v241, %v524
  %526 = vdwg.mxu0
  %527 = vmatprep.subr.bf16.mxu0 %v421
  %528 = vmatpush1.bf16.msra.mxu0 %v420
  %529 = vmatprep.subr.bf16.mxu0 %v423
  %530 = vmatpush1.bf16.msra.mxu0 %v422
  %531 = vmatprep.subr.bf16.mxu0 %v425
  %532 = vmatpush1.bf16.msra.mxu0 %v424
  %533 = vmatprep.subr.bf16.mxu0 %v427
  %534 = vmatpush1.bf16.msra.mxu0 %v426
  %535 = vmatprep.subr.bf16.mxu0 %v429
  %536 = vmatpush1.bf16.msra.mxu0 %v428
  %537 = vmatprep.subr.bf16.mxu0 %v431
  %538 = vmatpush1.bf16.msra.mxu0 %v430
  %539 = vmatprep.subr.bf16.mxu0 %v433
  %540 = vmatpush1.bf16.msra.mxu0 %v432
  %541 = vmatprep.subr.bf16.mxu0 %v435
  %542 = vmatpush1.bf16.msra.mxu0 %v434
  %543 = vmatprep.subr.bf16.mxu0 0
  %544 = vmatpush1.bf16.msra.mxu0 0
  %545 = vmatprep.subr.bf16.mxu0 0
  %546 = vmatpush1.bf16.msra.mxu0 0
  %547 = vmatprep.subr.bf16.mxu0 0
  %548 = vmatpush1.bf16.msra.mxu0 0
  %549 = vmatprep.subr.bf16.mxu0 0
  %550 = vmatpush1.bf16.msra.mxu0 0
  %551 = vmatprep.subr.bf16.mxu0 0
  %552 = vmatpush1.bf16.msra.mxu0 0
  %553 = vmatprep.subr.bf16.mxu0 0
  %554 = vmatpush1.bf16.msra.mxu0 0
  %555 = vmatprep.subr.bf16.mxu0 0
  %556 = vmatpush1.bf16.msra.mxu0 0
  %557 = vmatprep.subr.bf16.mxu0 0
  %558 = vmatpush1.bf16.msra.mxu0 0
  %559 = vmatprep.mubr.bf16.mxu0 0
  %560 = vmatmul.mubr.bf16.gmra.mrb[0].mxu0 %v183
  %v561 = vpop.f32.mrb[0].mxu0
  %v562 = vadd.f32 %v519, %v561
  %v563 = vpop.f32.mrb[0].mxu0
  %v564 = vadd.f32 %v521, %v563
  %v565 = vpop.f32.mrb[0].mxu0
  %v566 = vadd.f32 %v523, %v565
  %v567 = vpop.f32.mrb[0].mxu0
  %v568 = vadd.f32 %v525, %v567
  %569 = vdwg.mxu0
  %v570 = vmax.f32 %v562, 0.0
  %v571 = vmax.f32 %v564, 0.0
  %v572 = vmax.f32 %v566, 0.0
  %v573 = vmax.f32 %v568, 0.0
  %v574 = vpack.c.bf16 %v572, %v570
  %v575 = vpack.c.bf16 %v573, %v571
  %v576 = vld [vmem:[%s5] sm:$0xf]
  %v577 = vld [vmem:[%s5 + $0x4] sm:$0xf]
  %v578 = vld [vmem:[%s5 + $0x8] sm:$0xf]
  %v579 = vld [vmem:[%s5 + $0xc] sm:$0xf]
  %v580 = vld [vmem:[%s5 + $0x10] sm:$0xf]
  %v581 = vld [vmem:[%s5 + $0x14] sm:$0xf]
  %v582 = vld [vmem:[%s5 + $0x18] sm:$0xf]
  %v583 = vld [vmem:[%s5 + $0x1c] sm:$0xf]
  %v584 = vld [vmem:[%s5 + $0x20] sm:$0xf]
  %v585 = vld [vmem:[%s5 + $0x24] sm:$0xf]
  %v586 = vld [vmem:[%s5 + $0x28] sm:$0xf]
  %v587 = vld [vmem:[%s5 + $0x2c] sm:$0xf]
  %v588 = vld [vmem:[%s5 + $0x30] sm:$0xf]
  %v589 = vld [vmem:[%s5 + $0x34] sm:$0xf]
  %v590 = vld [vmem:[%s5 + $0x38] sm:$0xf]
  %v591 = vld [vmem:[%s5 + $0x3c] sm:$0xf]
  %v592 = vld [vmem:[%s5 + $0x40] sm:$0xf]
  %v593 = vld [vmem:[%s5 + $0x44] sm:$0xf]
  %v594 = vld [vmem:[%s5 + $0x48] sm:$0xf]
  %v595 = vld [vmem:[%s5 + $0x4c] sm:$0xf]
  %v596 = vld [vmem:[%s5 + $0x50] sm:$0xf]
  %v597 = vld [vmem:[%s5 + $0x54] sm:$0xf]
  %v598 = vld [vmem:[%s5 + $0x58] sm:$0xf]
  %v599 = vld [vmem:[%s5 + $0x5c] sm:$0xf]
  %v600 = vld [vmem:[%s6] sm:$0x1]
  %v602 = vlaneseq
  %v603 = vshrl.u32 %v602, 7
  %v604 = vsub.s32 0, %v603
  %v605 = vrot.slane %v600, %v604
  %v631 = vunpack.c.l.b16 %v576
  %v632 = vunpack.c.l.b16 %v577
  %v633 = vunpack.c.l.b16 %v578
  %v634 = vunpack.c.l.b16 %v579
  %v635 = vunpack.c.l.b16 %v580
  %v636 = vunpack.c.l.b16 %v581
  %v637 = vunpack.c.l.b16 %v582
  %v638 = vunpack.c.l.b16 %v583
  %v639 = vunpack.c.l.b16 %v584
  %v640 = vunpack.c.l.b16 %v585
  %v641 = vunpack.c.l.b16 %v586
  %v642 = vunpack.c.l.b16 %v587
  %v643 = vunpack.c.l.b16 %v588
  %v644 = vunpack.c.l.b16 %v589
  %v645 = vunpack.c.l.b16 %v590
  %v646 = vunpack.c.l.b16 %v591
  %v647 = vunpack.c.l.b16 %v592
  %v648 = vunpack.c.l.b16 %v593
  %v649 = vunpack.c.l.b16 %v594
  %v650 = vunpack.c.l.b16 %v595
  %v651 = vunpack.c.l.b16 %v596
  %v652 = vunpack.c.l.b16 %v597
  %v653 = vunpack.c.l.b16 %v598
  %v654 = vunpack.c.l.b16 %v599
  %v655 = vpack.c.b16 %v632, %v631
  %v656 = vpack.c.b16 %v634, %v633
  %v657 = vpack.c.b16 %v636, %v635
  %v658 = vpack.c.b16 %v638, %v637
  %v659 = vpack.c.b16 %v640, %v639
  %v660 = vpack.c.b16 %v642, %v641
  %v661 = vpack.c.b16 %v644, %v643
  %v662 = vpack.c.b16 %v646, %v645
  %v663 = vpack.c.b16 %v648, %v647
  %v664 = vpack.c.b16 %v650, %v649
  %v665 = vpack.c.b16 %v652, %v651
  %v666 = vpack.c.b16 %v654, %v653
  %vm679 = vcmask 523264
  %v681 = vsel %vm679, %v575, 0
  %683 = vmatprep.subr.bf16.mxu0 0
  %684 = vmatpush1.bf16.msra.mxu0 %v655
  %685 = vmatprep.subr.bf16.mxu0 0
  %686 = vmatpush1.bf16.msra.mxu0 %v656
  %687 = vmatprep.subr.bf16.mxu0 0
  %688 = vmatpush1.bf16.msra.mxu0 %v657
  %689 = vmatprep.subr.bf16.mxu0 0
  %690 = vmatpush1.bf16.msra.mxu0 %v658
  %691 = vmatprep.subr.bf16.mxu0 0
  %692 = vmatpush1.bf16.msra.mxu0 %v659
  %693 = vmatprep.subr.bf16.mxu0 0
  %694 = vmatpush1.bf16.msra.mxu0 %v660
  %695 = vmatprep.subr.bf16.mxu0 0
  %696 = vmatpush1.bf16.msra.mxu0 %v661
  %697 = vmatprep.subr.bf16.mxu0 0
  %698 = vmatpush1.bf16.msra.mxu0 %v662
  %699 = vmatprep.subr.bf16.mxu0 0
  %700 = vmatpush1.bf16.msra.mxu0 %v663
  %701 = vmatprep.subr.bf16.mxu0 0
  %702 = vmatpush1.bf16.msra.mxu0 %v664
  %703 = vmatprep.subr.bf16.mxu0 0
  %704 = vmatpush1.bf16.msra.mxu0 %v665
  %705 = vmatprep.subr.bf16.mxu0 0
  %706 = vmatpush1.bf16.msra.mxu0 %v666
  %707 = vmatprep.subr.bf16.mxu0 0
  %708 = vmatpush1.bf16.msra.mxu0 0
  %709 = vmatprep.subr.bf16.mxu0 0
  %710 = vmatpush1.bf16.msra.mxu0 0
  %711 = vmatprep.subr.bf16.mxu0 0
  %712 = vmatpush1.bf16.msra.mxu0 0
  %713 = vmatprep.subr.bf16.mxu0 0
  %714 = vmatpush1.bf16.msra.mxu0 0
  %715 = vmatprep.mubr.bf16.mxu0 %v681
  %716 = vmatmul.mubr.bf16.gmra.mrb[0].mxu0 %v574
  %v717 = vpop.f32.mrb[0].mxu0
  %v718 = vadd.f32 %v605, %v717
  %v719 = vpop.f32.mrb[0].mxu0
  %v720 = vpop.f32.mrb[0].mxu0
  %v721 = vadd.f32 %v605, %v720
  %v722 = vpop.f32.mrb[0].mxu0
  %723 = vdwg.mxu0
  %726 = vrot.lane.b32.xlu0 %v718, 127
  %v727 = vpop.permute.xlu0 %726
  %728 = vrot.lane.b32.xlu0 %v721, 127
  %v729 = vpop.permute.xlu0 %728
  %v732 = vmax.f32 %v718, %v727
  %v733 = vmax.f32 %v721, %v729
  %v734 = vsub.f32 %v718, %v727
  %v735 = vsub.f32 %v721, %v729
  %v736 = vand.u32 2147483647, %v734
  %v737 = vand.u32 2147483647, %v735
  %v738 = vsub.f32 0.0, %v736
  %v739 = vsub.f32 0.0, %v737
  %v740 = vmul.f32 %v738, 1.442695
  %v741 = vpow.pop %v740
  %v742 = vmul.f32 %v739, 1.442695
  %v743 = vpow.pop %v742
  %v744 = vadd.f32 %v741, 1.0
  %v745 = vlog2.pop %v744
  %v746 = vmul.f32 %v745, 0.6931472
  %v747 = vmul.f32 -0.5, %v741
  %v748 = vadd.f32 %v747, 1.0
  %v749 = vmul.f32 %v748, %v741
  %v750 = vand.u32 2147483647, %v741
  %vm751 = vcmp.lt.f32.partialorder %v750, 0.0004427343
  %v752 = vsel %vm751, %v749, %v746
  %v753 = vadd.f32 %v743, 1.0
  %v754 = vlog2.pop %v753
  %v755 = vmul.f32 %v754, 0.6931472
  %v756 = vmul.f32 -0.5, %v743
  %v757 = vadd.f32 %v756, 1.0
  %v758 = vmul.f32 %v757, %v743
  %v759 = vand.u32 2147483647, %v743
  %vm760 = vcmp.lt.f32.partialorder %v759, 0.0004427343
  %v761 = vsel %vm760, %v758, %v755
  %v762 = vadd.f32 %v732, %v752
  %v763 = vadd.f32 %v733, %v761
  %765 = vset.pattern.permute.xlu0 0
  %766 = vperm.xlu0 %765, %v762
  %v767 = vpop.permute.xlu0 %766
  %770 = vset.pattern.permute.xlu0 0
  %771 = vperm.xlu0 %770, %v763
  %v772 = vpop.permute.xlu0 %771
  %v774 = vsub.f32 %v718, %v767
  %v775 = vsub.f32 %v721, %v772
  %vm776 = vcmask 15360
  %777 = vst.msk [vmem:[%s7] sm:$0xff] %vm776, %v774
  %778 = vst.msk [vmem:[%s7 + $0x8] sm:$0xff] %vm776, %v775
  // Predicated region
  $region30: #{domain_classifier_forward.1} parent=0 // pred_check
    _
  $region31: #{domain_classifier_forward.1} parent=0 // pred_check_branch
    %780 = sbr.rel (0) target = $region33
  $region32: #{domain_classifier_forward.1} parent=0 // pred_region
    _
  $region33: #{domain_classifier_forward.1} parent=0 // pred_fallthru
    _
  // Predicated region
  $region34: #{domain_classifier_forward.1} parent=0 // pred_check
    _
  $region35: #{domain_classifier_forward.1} parent=0 // pred_check_branch
    %782 = sbr.rel (0) target = $region37
  $region36: #{domain_classifier_forward.1} parent=0 // pred_region
    _
  $region37: #{domain_classifier_forward.1} parent=0 // pred_fallthru
    _

</llo_original>
